<compile_context>
chip_gen: v7x
topology: tpu7x:2x2x1
jax: 0.10.0
libtpu: 0.0.40
codegen_flags: <defaults>
</compile_context>

<pallas_src>
import jax
import jax.numpy as jnp
from jax import lax
from jax.experimental import pallas as pl
from jax.experimental.pallas import tpu as pltpu

TVERSKY_ALPHA = 0.25
TVERSKY_BETA = 0.75
TVERSKY_SMOOTH = 1.0
FOCAL_ALPHA = 0.8
FOCAL_GAMMA = 2.0  # folded into an explicit (1-pt)*(1-pt) in the kernel

LANES = 512        # lane-dense slab width (multiple of 128)
SUBLANES = 8       # f32 sublane packing
BLOCK_ROWS = 512   # (512, 512) f32 block = 1 MiB per stream per buffer
NUM_CORES = 2      # leading "parallel" axis -> 2 TCs on v7x; serial elsewhere


def _hybrid_loss_kernel(n_sm, logits_ref, targets_ref, acc_ref):
    """Accumulates lane-parallel partials of [TP, FP, FN, focal_sum].

    acc_ref: (4, SUBLANES, LANES) f32 output block, resident across the inner
    (arbitrary) grid axis; one such block per core on the parallel axis.
    """
    c = pl.program_id(0)
    i = pl.program_id(1)

    @pl.when(i == 0)
    def _():
        acc_ref[...] = jnp.zeros_like(acc_ref)

    x = logits_ref[...].astype(jnp.float32)
    t = targets_ref[...].astype(jnp.float32)
    br, lanes = x.shape

    # In-kernel ragged-tail mask (replaces the old full-size f32 mask stream):
    # global flat index < n.  int32 is fine for n < 2**31 elements.
    block_id = c * pl.num_programs(1) + i
    base = block_id * (br * lanes)
    row_ids = lax.broadcasted_iota(jnp.int32, (br, lanes), 0)
    col_ids = lax.broadcasted_iota(jnp.int32, (br, lanes), 1)
    valid = (base + row_ids * lanes + col_ids) < n_sm[0]

    # Shared-exponential sigmoid / BCE-with-logits: one exp + one log1p per
    # element (vs. sigmoid + exp + log1p + exp(-bce) + pow previously).
    e = jnp.exp(-jnp.abs(x))
    inv = 1.0 / (1.0 + e)          # exact; pl.reciprocal(approx=True) is a further micro-opt
    p = jnp.where(x >= 0, inv, e * inv)                 # sigmoid(x)
    bce = jnp.maximum(x, 0.0) - x * t + jnp.log1p(e)    # BCE-with-logits
    pt = jnp.where(t > 0.5, p, 1.0 - p)                 # == exp(-bce) for binary targets
    one_m_pt = 1.0 - pt
    focal = FOCAL_ALPHA * one_m_pt * one_m_pt * bce     # gamma == 2 -> explicit square

    zero = jnp.zeros_like(x)
    pt_prod = p * t
    tp = jnp.where(valid, pt_prod, zero)
    fp = jnp.where(valid, p - pt_prod, zero)            # p * (1 - t)
    fn = jnp.where(valid, t - pt_prod, zero)            # (1 - p) * t
    fo = jnp.where(valid, focal, zero)

    # Pure-VPU fold (br, lanes) -> (SUBLANES, lanes): group rows by sublane
    # period and add vregs; the final cross-lane/sublane reduction happens
    # once, outside the kernel.
    def fold(v):
        return v.reshape(br // SUBLANES, SUBLANES, lanes).sum(axis=0)

    acc_ref[0] += fold(tp)
    acc_ref[1] += fold(fp)
    acc_ref[2] += fold(fn)
    acc_ref[3] += fold(fo)


def hybrid_loss(logits, targets):
    """HybridLoss.forward(logits, targets) via a Pallas TPU reduction kernel."""
    assert logits.shape == targets.shape
    n = logits.size

    flat_l = logits.reshape(-1)   # keep native dtype; cast to f32 in-kernel
    flat_t = targets.reshape(-1)

    # Align to a full (SUBLANES, LANES) row-group so the in-kernel fold and
    # (8, 128) tiling constraints hold.  Padded elements are masked in-kernel.
    chunk = SUBLANES * LANES
    n_pad = pl.cdiv(n, chunk) * chunk
    if n_pad != n:
        # TODO(synk): a tiny remainder kernel would avoid this copy for huge,
        # oddly-sized inputs; for aligned inputs this branch is skipped.
        flat_l = jnp.pad(flat_l, (0, n_pad - n))
        flat_t = jnp.pad(flat_t, (0, n_pad - n))

    rows = n_pad // LANES                      # multiple of SUBLANES
    logits2d = flat_l.reshape(rows, LANES)
    targets2d = flat_t.reshape(rows, LANES)

    block_rows = min(BLOCK_ROWS, rows)         # multiple of 8 either way
    nblocks = pl.cdiv(rows, block_rows)
    bpc = pl.cdiv(nblocks, NUM_CORES)          # blocks per core (inner grid)

    def in_map(c, i, n_sm):
        # Clamp so a core with fewer blocks re-reads a valid block; its
        # contribution is zeroed by the flat-index mask in the kernel.
        return (jnp.minimum(c * bpc + i, nblocks - 1), 0)

    in_spec = pl.BlockSpec((block_rows, LANES), in_map)

    acc = pl.pallas_call(
        _hybrid_loss_kernel,
        out_shape=jax.ShapeDtypeStruct((NUM_CORES, 4, SUBLANES, LANES), jnp.float32),
        grid_spec=pltpu.PrefetchScalarGridSpec(
            num_scalar_prefetch=1,             # n -> SMEM
            grid=(NUM_CORES, bpc),
            in_specs=[in_spec, in_spec],
            out_specs=pl.BlockSpec((None, 4, SUBLANES, LANES),
                                   lambda c, i, n_sm: (c, 0, 0, 0)),
        ),
        compiler_params=pltpu.CompilerParams(
            dimension_semantics=("parallel", "arbitrary"),
            # ~4 MiB of double-buffered input blocks: well inside the 32 MiB
            # scoped default everywhere, incl. the 64 MiB-VMEM v7x cores.
            vmem_limit_bytes=32 * 1024 * 1024,
        ),
    )(jnp.array([n], jnp.int32), logits2d, targets2d)

    sums = jnp.sum(acc, axis=(0, 2, 3))        # (4,) = [TP, FP, FN, focal_sum]
    tp, fp, fn, focal_sum = sums[0], sums[1], sums[2], sums[3]

    tversky = (tp + TVERSKY_SMOOTH) / (
        tp + TVERSKY_ALPHA * fp + TVERSKY_BETA * fn + TVERSKY_SMOOTH)
    tversky_loss = 1.0 - tversky
    focal_loss = focal_sum / n
    return tversky_loss + focal_loss


def _hybrid_loss_ref(logits, targets):
    """Pure-JAX reference (straightforward formulation) for validation."""
    x = logits.reshape(-1).astype(jnp.float32)
    t = targets.reshape(-1).astype(jnp.float32)
    p = jax.nn.sigmoid(x)
    tp = jnp.sum(p * t)
    fp = jnp.sum(p * (1.0 - t))
    fn = jnp.sum((1.0 - p) * t)
    tversky = (tp + TVERSKY_SMOOTH) / (
        tp + TVERSKY_ALPHA * fp + TVERSKY_BETA * fn + TVERSKY_SMOOTH)
    bce = jnp.maximum(x, 0.0) - x * t + jnp.log1p(jnp.exp(-jnp.abs(x)))
    pt = jnp.exp(-bce)
    focal = jnp.mean(FOCAL_ALPHA * (1.0 - pt) ** FOCAL_GAMMA * bce)
    return (1.0 - tversky) + focal


if __name__ == "__main__":
    key = jax.random.PRNGKey(0)
    k1, k2 = jax.random.split(key)
    shape = (2, 4, 16, 16)  # (B, C, H, W), like the PyTorch NCHW inputs
    logits = jax.random.normal(k1, shape, dtype=jnp.float32)
    targets = (jax.random.uniform(k2, shape) > 0.5).astype(jnp.float32)

    loss = jax.jit(hybrid_loss)(logits, targets)
    jax.block_until_ready(loss)

    ref = _hybrid_loss_ref(logits, targets)
    assert jnp.allclose(loss, ref, rtol=1e-4, atol=1e-5), (loss, ref)

    print("KERNEL_OK")
</pallas_src>

<mosaic_0001>
module attributes {stable_mosaic.version = 11 : i64} {
  func.func @_hybrid_loss_kernel(%arg0: i32, %arg1: i32, %arg2: memref<1xi32, #tpu.memory_space<smem>>, %arg3: memref<8x512xf32, #tpu.memory_space<vmem>>, %arg4: memref<8x512xf32, #tpu.memory_space<vmem>>, %arg5: memref<1x4x8x512xf32, #tpu.memory_space<vmem>>) attributes {dimension_semantics = [#tpu.dimension_semantics<parallel>, #tpu.dimension_semantics<arbitrary>], iteration_bounds = array<i64: 2, 1>, scalar_prefetch = 1 : i64, scratch_operands = 0 : i64, tpu.core_type = #tpu.core_type<tc>, window_params = [{transform_indices = @transform_0, window_bounds = array<i64: 8, 512>}, {transform_indices = @transform_1, window_bounds = array<i64: 8, 512>}, {transform_indices = @transform_2, window_bounds = array<i64: 1, 4, 8, 512>}]} {
    %c0_i32 = arith.constant 0 : i32
    %0 = arith.cmpi eq, %arg1, %c0_i32 : i32
    %1 = arith.extui %0 : i1 to i32
    %c0_i32_0 = arith.constant 0 : i32
    %2 = arith.cmpi ne, %1, %c0_i32_0 : i32
    scf.if %2 {
      %cst_47 = arith.constant 0.000000e+00 : f32
      %87 = vector.broadcast %cst_47 : f32 to vector<4x8x512xf32>
      %c0_48 = arith.constant 0 : index
      %c0_49 = arith.constant 0 : index
      %c0_50 = arith.constant 0 : index
      %c0_51 = arith.constant 0 : index
      %88 = vector.load %arg5[%c0_48, %c0_49, %c0_50, %c0_51] : memref<1x4x8x512xf32, #tpu.memory_space<vmem>>, vector<1x4x8x512xf32>
      %89 = vector.shape_cast %88 : vector<1x4x8x512xf32> to vector<4x8x512xf32>
      %90 = vector.shape_cast %87 : vector<4x8x512xf32> to vector<1x4x8x512xf32>
      tpu.vector_store %arg5[%c0_48, %c0_49, %c0_50, %c0_51], %90 {strides = array<i32>} : memref<1x4x8x512xf32, #tpu.memory_space<vmem>>, vector<1x4x8x512xf32>,
    } else {
    }
    %c0 = arith.constant 0 : index
    %c0_1 = arith.constant 0 : index
    %3 = vector.load %arg3[%c0, %c0_1] : memref<8x512xf32, #tpu.memory_space<vmem>>, vector<8x512xf32>
    %c0_2 = arith.constant 0 : index
    %c0_3 = arith.constant 0 : index
    %4 = vector.load %arg4[%c0_2, %c0_3] : memref<8x512xf32, #tpu.memory_space<vmem>>, vector<8x512xf32>
    %c1_i32 = arith.constant 1 : i32
    %5 = arith.muli %arg0, %c1_i32 : i32
    %6 = arith.addi %5, %arg1 : i32
    %c4096_i32 = arith.constant 4096 : i32
    %7 = arith.muli %6, %c4096_i32 : i32
    %8 = tpu.iota {dimensions = array<i32: 0>} : vector<8x512xi32>
    %9 = tpu.iota {dimensions = array<i32: 1>} : vector<8x512xi32>
    %c512_i32 = arith.constant 512 : i32
    %10 = vector.broadcast %c512_i32 : i32 to vector<8x512xi32>
    %11 = arith.muli %8, %10 : vector<8x512xi32>
    %12 = vector.broadcast %7 : i32 to vector<8x512xi32>
    %13 = arith.addi %12, %11 : vector<8x512xi32>
    %14 = arith.addi %13, %9 : vector<8x512xi32>
    %c0_4 = arith.constant 0 : index
    %15 = memref.load %arg2[%c0_4] : memref<1xi32, #tpu.memory_space<smem>>
    %16 = vector.broadcast %15 : i32 to vector<8x512xi32>
    %17 = arith.cmpi slt, %14, %16 : vector<8x512xi32>
    %18 = math.absf %3 : vector<8x512xf32>
    %cst = arith.constant 0.000000e+00 : f32
    %19 = vector.broadcast %cst : f32 to vector<8x512xf32>
    %20 = arith.subf %19, %18 : vector<8x512xf32>
    %21 = math.exp %20 : vector<8x512xf32>
    %cst_5 = arith.constant 1.000000e+00 : f32
    %22 = vector.broadcast %cst_5 : f32 to vector<8x512xf32>
    %23 = arith.addf %22, %21 : vector<8x512xf32>
    %cst_6 = arith.constant 1.000000e+00 : f32
    %24 = vector.broadcast %cst_6 : f32 to vector<8x512xf32>
    %25 = arith.divf %24, %23 : vector<8x512xf32>
    %cst_7 = arith.constant 0.000000e+00 : f32
    %26 = vector.broadcast %cst_7 : f32 to vector<8x512xf32>
    %27 = arith.cmpf oge, %3, %26 : vector<8x512xf32>
    %28 = arith.mulf %21, %25 : vector<8x512xf32>
    %29 = arith.select %27, %25, %28 : vector<8x512xi1>, vector<8x512xf32>
    %cst_8 = arith.constant 0.000000e+00 : f32
    %30 = vector.broadcast %cst_8 : f32 to vector<8x512xf32>
    %31 = arith.maximumf %3, %30 : vector<8x512xf32>
    %32 = arith.mulf %3, %4 : vector<8x512xf32>
    %33 = arith.subf %31, %32 : vector<8x512xf32>
    %34 = math.log1p %21 : vector<8x512xf32>
    %35 = arith.addf %33, %34 : vector<8x512xf32>
    %cst_9 = arith.constant 5.000000e-01 : f32
    %36 = vector.broadcast %cst_9 : f32 to vector<8x512xf32>
    %37 = arith.cmpf ogt, %4, %36 : vector<8x512xf32>
    %cst_10 = arith.constant 1.000000e+00 : f32
    %38 = vector.broadcast %cst_10 : f32 to vector<8x512xf32>
    %39 = arith.subf %38, %29 : vector<8x512xf32>
    %40 = arith.select %37, %29, %39 : vector<8x512xi1>, vector<8x512xf32>
    %cst_11 = arith.constant 1.000000e+00 : f32
    %41 = vector.broadcast %cst_11 : f32 to vector<8x512xf32>
    %42 = arith.subf %41, %40 : vector<8x512xf32>
    %cst_12 = arith.constant 8.000000e-01 : f32
    %43 = vector.broadcast %cst_12 : f32 to vector<8x512xf32>
    %44 = arith.mulf %43, %42 : vector<8x512xf32>
    %45 = arith.mulf %44, %42 : vector<8x512xf32>
    %46 = arith.mulf %45, %35 : vector<8x512xf32>
    %cst_13 = arith.constant 0.000000e+00 : f32
    %47 = vector.broadcast %cst_13 : f32 to vector<8x512xf32>
    %48 = arith.mulf %29, %4 : vector<8x512xf32>
    %49 = arith.select %17, %48, %47 : vector<8x512xi1>, vector<8x512xf32>
    %50 = arith.subf %29, %48 : vector<8x512xf32>
    %51 = arith.select %17, %50, %47 : vector<8x512xi1>, vector<8x512xf32>
    %52 = arith.subf %4, %48 : vector<8x512xf32>
    %53 = arith.select %17, %52, %47 : vector<8x512xi1>, vector<8x512xf32>
    %54 = arith.select %17, %46, %47 : vector<8x512xi1>, vector<8x512xf32>
    %c0_14 = arith.constant 0 : index
    %c0_15 = arith.constant 0 : index
    %c0_16 = arith.constant 0 : index
    %c0_17 = arith.constant 0 : index
    %55 = vector.load %arg5[%c0_14, %c0_15, %c0_16, %c0_17] : memref<1x4x8x512xf32, #tpu.memory_space<vmem>>, vector<1x1x8x512xf32>
    %56 = vector.shape_cast %55 : vector<1x1x8x512xf32> to vector<8x512xf32>
    %57 = vector.shape_cast %49 : vector<8x512xf32> to vector<1x8x512xf32>
    %cst_18 = arith.constant dense<0.000000e+00> : vector<8x512xf32>
    %58 = vector.multi_reduction <add>, %57, %cst_18 [0] : vector<1x8x512xf32> to vector<8x512xf32>
    %59 = arith.addf %56, %58 : vector<8x512xf32>
    %c0_19 = arith.constant 0 : index
    %c0_20 = arith.constant 0 : index
    %c0_21 = arith.constant 0 : index
    %c0_22 = arith.constant 0 : index
    %60 = vector.load %arg5[%c0_19, %c0_20, %c0_21, %c0_22] : memref<1x4x8x512xf32, #tpu.memory_space<vmem>>, vector<1x1x8x512xf32>
    %61 = vector.shape_cast %60 : vector<1x1x8x512xf32> to vector<8x512xf32>
    %62 = vector.shape_cast %59 : vector<8x512xf32> to vector<1x1x8x512xf32>
    tpu.vector_store %arg5[%c0_19, %c0_20, %c0_21, %c0_22], %62 {strides = array<i32>} : memref<1x4x8x512xf32, #tpu.memory_space<vmem>>, vector<1x1x8x512xf32>,
    %c0_23 = arith.constant 0 : index
    %c1 = arith.constant 1 : index
    %c0_24 = arith.constant 0 : index
    %c0_25 = arith.constant 0 : index
    %63 = vector.load %arg5[%c0_23, %c1, %c0_24, %c0_25] : memref<1x4x8x512xf32, #tpu.memory_space<vmem>>, vector<1x1x8x512xf32>
    %64 = vector.shape_cast %63 : vector<1x1x8x512xf32> to vector<8x512xf32>
    %65 = vector.shape_cast %51 : vector<8x512xf32> to vector<1x8x512xf32>
    %cst_26 = arith.constant dense<0.000000e+00> : vector<8x512xf32>
    %66 = vector.multi_reduction <add>, %65, %cst_26 [0] : vector<1x8x512xf32> to vector<8x512xf32>
    %67 = arith.addf %64, %66 : vector<8x512xf32>
    %c0_27 = arith.constant 0 : index
    %c1_28 = arith.constant 1 : index
    %c0_29 = arith.constant 0 : index
    %c0_30 = arith.constant 0 : index
    %68 = vector.load %arg5[%c0_27, %c1_28, %c0_29, %c0_30] : memref<1x4x8x512xf32, #tpu.memory_space<vmem>>, vector<1x1x8x512xf32>
    %69 = vector.shape_cast %68 : vector<1x1x8x512xf32> to vector<8x512xf32>
    %70 = vector.shape_cast %67 : vector<8x512xf32> to vector<1x1x8x512xf32>
    tpu.vector_store %arg5[%c0_27, %c1_28, %c0_29, %c0_30], %70 {strides = array<i32>} : memref<1x4x8x512xf32, #tpu.memory_space<vmem>>, vector<1x1x8x512xf32>,
    %c0_31 = arith.constant 0 : index
    %c2 = arith.constant 2 : index
    %c0_32 = arith.constant 0 : index
    %c0_33 = arith.constant 0 : index
    %71 = vector.load %arg5[%c0_31, %c2, %c0_32, %c0_33] : memref<1x4x8x512xf32, #tpu.memory_space<vmem>>, vector<1x1x8x512xf32>
    %72 = vector.shape_cast %71 : vector<1x1x8x512xf32> to vector<8x512xf32>
    %73 = vector.shape_cast %53 : vector<8x512xf32> to vector<1x8x512xf32>
    %cst_34 = arith.constant dense<0.000000e+00> : vector<8x512xf32>
    %74 = vector.multi_reduction <add>, %73, %cst_34 [0] : vector<1x8x512xf32> to vector<8x512xf32>
    %75 = arith.addf %72, %74 : vector<8x512xf32>
    %c0_35 = arith.constant 0 : index
    %c2_36 = arith.constant 2 : index
    %c0_37 = arith.constant 0 : index
    %c0_38 = arith.constant 0 : index
    %76 = vector.load %arg5[%c0_35, %c2_36, %c0_37, %c0_38] : memref<1x4x8x512xf32, #tpu.memory_space<vmem>>, vector<1x1x8x512xf32>
    %77 = vector.shape_cast %76 : vector<1x1x8x512xf32> to vector<8x512xf32>
    %78 = vector.shape_cast %75 : vector<8x512xf32> to vector<1x1x8x512xf32>
    tpu.vector_store %arg5[%c0_35, %c2_36, %c0_37, %c0_38], %78 {strides = array<i32>} : memref<1x4x8x512xf32, #tpu.memory_space<vmem>>, vector<1x1x8x512xf32>,
    %c0_39 = arith.constant 0 : index
    %c3 = arith.constant 3 : index
    %c0_40 = arith.constant 0 : index
    %c0_41 = arith.constant 0 : index
    %79 = vector.load %arg5[%c0_39, %c3, %c0_40, %c0_41] : memref<1x4x8x512xf32, #tpu.memory_space<vmem>>, vector<1x1x8x512xf32>
    %80 = vector.shape_cast %79 : vector<1x1x8x512xf32> to vector<8x512xf32>
    %81 = vector.shape_cast %54 : vector<8x512xf32> to vector<1x8x512xf32>
    %cst_42 = arith.constant dense<0.000000e+00> : vector<8x512xf32>
    %82 = vector.multi_reduction <add>, %81, %cst_42 [0] : vector<1x8x512xf32> to vector<8x512xf32>
    %83 = arith.addf %80, %82 : vector<8x512xf32>
    %c0_43 = arith.constant 0 : index
    %c3_44 = arith.constant 3 : index
    %c0_45 = arith.constant 0 : index
    %c0_46 = arith.constant 0 : index
    %84 = vector.load %arg5[%c0_43, %c3_44, %c0_45, %c0_46] : memref<1x4x8x512xf32, #tpu.memory_space<vmem>>, vector<1x1x8x512xf32>
    %85 = vector.shape_cast %84 : vector<1x1x8x512xf32> to vector<8x512xf32>
    %86 = vector.shape_cast %83 : vector<8x512xf32> to vector<1x1x8x512xf32>
    tpu.vector_store %arg5[%c0_43, %c3_44, %c0_45, %c0_46], %86 {strides = array<i32>} : memref<1x4x8x512xf32, #tpu.memory_space<vmem>>, vector<1x1x8x512xf32>,
    return
  }
  func.func @transform_0(%arg0: i32, %arg1: i32, %arg2: memref<1xi32, #tpu.memory_space<smem>>) -> (i32, i32) {
    %c1_i32 = arith.constant 1 : i32
    %0 = arith.muli %arg0, %c1_i32 : i32
    %1 = arith.addi %0, %arg1 : i32
    %c0_i32 = arith.constant 0 : i32
    %2 = arith.minsi %1, %c0_i32 : i32
    %c0_i32_0 = arith.constant 0 : i32
    %c0_i32_1 = arith.constant 0 : i32
    return %2, %c0_i32_0 : i32, i32
  }
  func.func @transform_1(%arg0: i32, %arg1: i32, %arg2: memref<1xi32, #tpu.memory_space<smem>>) -> (i32, i32) {
    %c1_i32 = arith.constant 1 : i32
    %0 = arith.muli %arg0, %c1_i32 : i32
    %1 = arith.addi %0, %arg1 : i32
    %c0_i32 = arith.constant 0 : i32
    %2 = arith.minsi %1, %c0_i32 : i32
    %c0_i32_0 = arith.constant 0 : i32
    %c0_i32_1 = arith.constant 0 : i32
    return %2, %c0_i32_0 : i32, i32
  }
  func.func @transform_2(%arg0: i32, %arg1: i32, %arg2: memref<1xi32, #tpu.memory_space<smem>>) -> (i32, i32, i32, i32) {
    %c0_i32 = arith.constant 0 : i32
    %c0_i32_0 = arith.constant 0 : i32
    %c0_i32_1 = arith.constant 0 : i32
    %c0_i32_2 = arith.constant 0 : i32
    return %arg0, %c0_i32, %c0_i32_0, %c0_i32_1 : i32, i32, i32, i32
  }
}

</mosaic_0001>

<llo_original>
// kernel: hybrid_loss.1
$region0: #{hybrid_loss.1}
  #allocation0 [shape = 'u32[]', space=smem, size = 0x4, offset = 0x4, fixed_abs, tag = 'smem constant byte address 0x4 - core index']
  #allocation1 [shape = 'u32[144,128]{1,0:T(1,128)}', space=vmem, size = 0x12000, scoped, tag = 'internal scratch']
  #allocation2 [shape = 's32[1]{0}', space=sflag, size = 0x4, scoped, tag = 'scoped memory for hybrid_loss.1']
  #allocation3 [shape = 's32[1]{0:T(128)S(6)}', space=smem, size = 0x200, scoped, tag = 'prefetched SMEM operand 0']
  %s0 = inlined_call_operand.<no memory space> [shape: s32[1], index: 0, kind: input, shape index: {}]
  %s1 = inlined_call_operand.vmem [shape: f32[8,512], index: 1, kind: input, shape index: {}]
  %s2 = inlined_call_operand.vmem [shape: f32[8,512], index: 2, kind: input, shape index: {}]
  %s3 = inlined_call_operand.vmem [shape: f32[2,4,8,512], index: 3, kind: output, shape index: {}]
  %s4 = sld [smem:[#allocation0]]
  $region45: #{hybrid_loss.1} parent=0
    _
  %s6 = ssub.s32 1, %s4
  %s7 = scalar_select 0, %s6, %s4
  %8 = sst [smem:[#allocation3]] %s0
  loop: start=0, step=1, limit=4
  $region2: #{hybrid_loss.1} parent=0 // loop_pre_header
    _
  $region3: #{hybrid_loss.1} parent=0 // loop_header
    %s10 = sphi 0, %s14
    %p11 = scmp.ge.s32.totalorder %s10, 4
    %s17 = sphi 0, %s29
    %s18 = sphi 0, %s25
    %s19 = sphi 0, %s17
    %s20 = sphi 0, %s18
    %s21 = sphi 0, %s19
    %s22 = sphi 0, %s20
    %s38 = sphi 0, %s40
    %s41 = sphi 0, %s38
    %s42 = sphi 0, %s41
    %s58 = sphi 0, %s42
    %s70 = sphi 0, %s72
    %s73 = sphi 0, %s70
    %s74 = sphi 0, %s73
    %s90 = sphi 0, %s74
    %s96 = sphi 0, %s98
    %s99 = sphi 0, %s96
    %s100 = sphi 0, %s99
    %s116 = sphi 0, %s100
  $region4: #{hybrid_loss.1} parent=0 // loop_header_branch
    %13 = sbr.rel (%p11) target = $region8
  $region5: #{hybrid_loss.1} parent=0 // loop_body
    %s15 = ssub.s32 %s10, 1
    %s16 = ssub.s32 %s10, 2
    %s23 = sadd.s32 1, %s18
    %p24 = scmp.ge.s32.totalorder %s23, 1
    %s25 = scalar_select %p24, 0, %s23
    %s26 = sadd.s32 1, %s17
    %s27 = scalar_select %p24, %s26, %s17
    %p28 = scmp.ge.s32.totalorder %s27, 2
    %s29 = scalar_select %p28, 0, %s27
    %s30 = sadd.s32 %s17, %s18
    %p31 = scmp.lt.s32.totalorder %s30, 0
    %s32 = scalar_select %p31, %s30, 0
    %s33 = sadd.s32 %s29, %s25
    %p34 = scmp.lt.s32.totalorder %s33, 0
    %s35 = scalar_select %p34, %s33, 0
    %s36 = ssub.s32 %s32, %s35
    %p37 = scmp.eq.s32.totalorder %s36, 0
    %s39 = sadd.s32 %s38, 1
    %s40 = scalar_select %p37, %s38, %s39
    %p43 = pneg %p37
    %p44 = scmp.eq.s32.totalorder %s10, 1
    %p45 = por %p43, %p44
    %p46 = scmp.ne.s32.totalorder %s38, %s41
    %p47 = scmp.eq.s32.totalorder %s10, 0
    %p48 = por %p46, %p47
    %p49 = scmp.ne.s32.totalorder %s38, %s41
    %p50 = scmp.eq.s32.totalorder %s15, 1
    %p51 = por %p49, %p50
    %p52 = scmp.ne.s32.totalorder %s41, %s42
    %p53 = scmp.eq.s32.totalorder %s15, 0
    %p54 = por %p52, %p53
    %p55 = scmp.ne.s32.totalorder %s41, %s42
    %p56 = scmp.eq.s32.totalorder %s16, 1
    %p57 = por %p55, %p56
    %p59 = scmp.ne.s32.totalorder %s42, %s58
    %p60 = scmp.eq.s32.totalorder %s16, 0
    %p61 = por %p59, %p60
    %s62 = sadd.s32 %s17, %s18
    %p63 = scmp.lt.s32.totalorder %s62, 0
    %s64 = scalar_select %p63, %s62, 0
    %s65 = sadd.s32 %s29, %s25
    %p66 = scmp.lt.s32.totalorder %s65, 0
    %s67 = scalar_select %p66, %s65, 0
    %s68 = ssub.s32 %s64, %s67
    %p69 = scmp.eq.s32.totalorder %s68, 0
    %s71 = sadd.s32 %s70, 1
    %s72 = scalar_select %p69, %s70, %s71
    %p75 = pneg %p69
    %p76 = scmp.eq.s32.totalorder %s10, 1
    %p77 = por %p75, %p76
    %p78 = scmp.ne.s32.totalorder %s70, %s73
    %p79 = scmp.eq.s32.totalorder %s10, 0
    %p80 = por %p78, %p79
    %p81 = scmp.ne.s32.totalorder %s70, %s73
    %p82 = scmp.eq.s32.totalorder %s15, 1
    %p83 = por %p81, %p82
    %p84 = scmp.ne.s32.totalorder %s73, %s74
    %p85 = scmp.eq.s32.totalorder %s15, 0
    %p86 = por %p84, %p85
    %p87 = scmp.ne.s32.totalorder %s73, %s74
    %p88 = scmp.eq.s32.totalorder %s16, 1
    %p89 = por %p87, %p88
    %p91 = scmp.ne.s32.totalorder %s74, %s90
    %p92 = scmp.eq.s32.totalorder %s16, 0
    %p93 = por %p91, %p92
    %s94 = ssub.s32 %s17, %s29
    %p95 = scmp.eq.s32.totalorder %s94, 0
    %s97 = sadd.s32 %s96, 1
    %s98 = scalar_select %p95, %s96, %s97
    %p101 = pneg %p95
    %p102 = scmp.eq.s32.totalorder %s10, 1
    %p103 = por %p101, %p102
    %p104 = scmp.ne.s32.totalorder %s96, %s99
    %p105 = scmp.eq.s32.totalorder %s10, 0
    %p106 = por %p104, %p105
    %p107 = scmp.ne.s32.totalorder %s96, %s99
    %p108 = scmp.eq.s32.totalorder %s15, 1
    %p109 = por %p107, %p108
    %p110 = scmp.ne.s32.totalorder %s99, %s100
    %p111 = scmp.eq.s32.totalorder %s15, 0
    %p112 = por %p110, %p111
    %p113 = scmp.ne.s32.totalorder %s99, %s100
    %p114 = scmp.eq.s32.totalorder %s16, 1
    %p115 = por %p113, %p114
    %p117 = scmp.ne.s32.totalorder %s100, %s116
    %p118 = scmp.eq.s32.totalorder %s16, 0
    %p119 = por %p117, %p118
    %p120 = scmp.le.s32.totalorder 1, %s10
    %p121 = scmp.lt.s32.totalorder %s10, 3
    %p122 = pnand %p120, %p121
    %p123 = pneg %p122
    // Predicated region
    $region9: #{hybrid_loss.1} parent=5 // pred_check
      _
    $region10: #{hybrid_loss.1} parent=5 // pred_check_branch
      %125 = sbr.rel (%p122) target = $region12
    $region11: #{hybrid_loss.1} parent=5 // pred_region
      %s126 = ssub.s32 %s10, 1
    $region12: #{hybrid_loss.1} parent=5 // pred_fallthru
      _
    %p127 = scmp.lt.s32.totalorder %s10, 2
    // Predicated region
    $region13: #{hybrid_loss.1} parent=5 // pred_check
      %p128 = pneg %p127
    $region14: #{hybrid_loss.1} parent=5 // pred_check_branch
      %130 = sbr.rel (%p128) target = $region16
    $region15: #{hybrid_loss.1} parent=5 // pred_region
      // Predicated region
      $region17: #{hybrid_loss.1} parent=15 // pred_check
        %p131 = pneg %p48
      $region18: #{hybrid_loss.1} parent=15 // pred_check_branch
        %133 = sbr.rel (%p131) target = $region20
      $region19: #{hybrid_loss.1} parent=15 // pred_region
        %s134 = sadd.s32 %s17, %s18
        %p135 = scmp.lt.s32.totalorder %s134, 0
        %s136 = scalar_select %p135, %s134, 0
        %p137 = scmp.lt.s32.totalorder %s136, 0
        %s138 = scalar_select %p137, %s136, 0
        %s139 = smul.addr %s138, 4
        %s140 = smul.addr %s139, 8
        %s141 = scalar_lea.vmem %s1, %s140
        %s142 = sadd.s32 %s17, %s18
        %p143 = scmp.lt.s32.totalorder %s142, 0
        %s144 = scalar_select %p143, %s142, 0
      $region20: #{hybrid_loss.1} parent=15 // pred_fallthru
        _
      // Predicated region
      $region21: #{hybrid_loss.1} parent=15 // pred_check
        %p145 = pneg %p80
      $region22: #{hybrid_loss.1} parent=15 // pred_check_branch
        %147 = sbr.rel (%p145) target = $region24
      $region23: #{hybrid_loss.1} parent=15 // pred_region
        %s148 = sadd.s32 %s17, %s18
        %p149 = scmp.lt.s32.totalorder %s148, 0
        %s150 = scalar_select %p149, %s148, 0
        %p151 = scmp.lt.s32.totalorder %s150, 0
        %s152 = scalar_select %p151, %s150, 0
        %s153 = smul.addr %s152, 4
        %s154 = smul.addr %s153, 8
        %s155 = scalar_lea.vmem %s2, %s154
        %s156 = sadd.s32 %s17, %s18
        %p157 = scmp.lt.s32.totalorder %s156, 0
        %s158 = scalar_select %p157, %s156, 0
      $region24: #{hybrid_loss.1} parent=15 // pred_fallthru
        _
    $region16: #{hybrid_loss.1} parent=5 // pred_fallthru
      _
    %p159 = scmp.le.s32.totalorder 1, %s10
    %p160 = scmp.lt.s32.totalorder %s10, 3
    %p161 = pnand %p159, %p160
    %p162 = pneg %p161
    // Predicated region
    $region25: #{hybrid_loss.1} parent=5 // pred_check
      _
    $region26: #{hybrid_loss.1} parent=5 // pred_check_branch
      %164 = sbr.rel (%p161) target = $region28
    $region27: #{hybrid_loss.1} parent=5 // pred_region
      %s165 = ssub.s32 %s10, 1
      %s166 = sadd.s32 %s19, %s20
      %p167 = scmp.lt.s32.totalorder %s166, 0
      %s168 = scalar_select %p167, %s166, 0
      %p169 = scmp.lt.s32.totalorder %s168, 0
      %s170 = scalar_select %p169, %s168, 0
      %s171 = smul.addr %s170, 4
      %s172 = smul.addr %s171, 8
      %s173 = scalar_lea.vmem %s1, %s172
      %p174 = pneg %p54
      %p175 = pneg %p51
      %s176 = sadd.s32 %s19, %s20
      %p177 = scmp.lt.s32.totalorder %s176, 0
      %s178 = scalar_select %p177, %s176, 0
      %p179 = scmp.lt.s32.totalorder %s178, 0
      %s180 = scalar_select %p179, %s178, 0
      %s181 = smul.addr %s180, 4
      %s182 = smul.addr %s181, 8
      %s183 = scalar_lea.vmem %s2, %s182
      %p184 = pneg %p86
      %p185 = pneg %p83
      %p186 = pneg %p112
      %p187 = pneg %p109
      %p188 = scmp.lt.s32.totalorder %s19, 1
      %s189 = scalar_select %p188, %s19, 1
      %s190 = smul.addr %s189, 16
      %s191 = smul.addr %s190, 8
      %s192 = scalar_lea.vmem %s3, %s191
      %s193 = sadd.s32 %s19, %s20
      %p194 = scmp.lt.s32.totalorder %s193, 0
      %s195 = scalar_select %p194, %s193, 0
      %p196 = scmp.lt.s32.totalorder %s195, 0
      %s197 = scalar_select %p196, %s195, 0
      %s198 = smul.addr %s197, 4
      %s199 = smul.addr %s198, 8
      %s200 = scalar_lea.vmem %s1, %s199
      %s201 = sadd.s32 %s19, %s20
      %p202 = scmp.lt.s32.totalorder %s201, 0
      %s203 = scalar_select %p202, %s201, 0
      %s204 = sadd.s32 %s19, %s20
      %p205 = scmp.lt.s32.totalorder %s204, 0
      %s206 = scalar_select %p205, %s204, 0
      %p207 = scmp.lt.s32.totalorder %s206, 0
      %s208 = scalar_select %p207, %s206, 0
      %s209 = smul.addr %s208, 4
      %s210 = smul.addr %s209, 8
      %s211 = scalar_lea.vmem %s2, %s210
      %s212 = sadd.s32 %s19, %s20
      %p213 = scmp.lt.s32.totalorder %s212, 0
      %s214 = scalar_select %p213, %s212, 0
      %p215 = scmp.lt.s32.totalorder %s19, 1
      %s216 = scalar_select %p215, %s19, 1
      %s217 = smul.addr %s216, 16
      %s218 = smul.addr %s217, 8
      %s219 = scalar_lea.vmem %s3, %s218
      %p220 = scmp.eq.s32.totalorder %s20, 0
      // Predicated region
      $region29: #{hybrid_loss.1} parent=27 // pred_check
        %p221 = pneg %p220
      $region30: #{hybrid_loss.1} parent=27 // pred_check_branch
        %223 = sbr.rel (%p221) target = $region32
      $region31: #{hybrid_loss.1} parent=27 // pred_region
        %224 = vst [vmem:[%s219] sm:$0xff] 0.0
        %225 = vst [vmem:[%s219 + $0x8] sm:$0xff] 0.0
        %226 = vst [vmem:[%s219 + $0x10] sm:$0xff] 0.0
        %227 = vst [vmem:[%s219 + $0x18] sm:$0xff] 0.0
        %228 = vst [vmem:[%s219 + $0x20] sm:$0xff] 0.0
        %229 = vst [vmem:[%s219 + $0x28] sm:$0xff] 0.0
        %230 = vst [vmem:[%s219 + $0x30] sm:$0xff] 0.0
        %231 = vst [vmem:[%s219 + $0x38] sm:$0xff] 0.0
        %232 = vst [vmem:[%s219 + $0x40] sm:$0xff] 0.0
        %233 = vst [vmem:[%s219 + $0x48] sm:$0xff] 0.0
        %234 = vst [vmem:[%s219 + $0x50] sm:$0xff] 0.0
        %235 = vst [vmem:[%s219 + $0x58] sm:$0xff] 0.0
        %236 = vst [vmem:[%s219 + $0x60] sm:$0xff] 0.0
        %237 = vst [vmem:[%s219 + $0x68] sm:$0xff] 0.0
        %238 = vst [vmem:[%s219 + $0x70] sm:$0xff] 0.0
        %239 = vst [vmem:[%s219 + $0x78] sm:$0xff] 0.0
      $region32: #{hybrid_loss.1} parent=27 // pred_fallthru
        _
      %v240 = vld [vmem:[%s200] sm:$0xff]
      %v241 = vld [vmem:[%s200 + $0x8] sm:$0xff]
      %v242 = vld [vmem:[%s200 + $0x10] sm:$0xff]
      %v243 = vld [vmem:[%s200 + $0x18] sm:$0xff]
      %v244 = vld [vmem:[%s211] sm:$0xff]
      %v245 = vld [vmem:[%s211 + $0x8] sm:$0xff]
      %v246 = vld [vmem:[%s211 + $0x10] sm:$0xff]
      %v247 = vld [vmem:[%s211 + $0x18] sm:$0xff]
      %s248 = sadd.s32 %s19, %s20
      %s249 = smul.u32 %s248, 4096
      %v250 = vlaneseq
      %v251 = vshrl.u32 %v250, 7
      %v252 = vlaneseq
      %v253 = vand.u32 %v252, 127
      %v254 = vadd.s32 %v253, 128
      %v255 = vadd.s32 %v253, 256
      %v256 = vadd.s32 %v253, 384
      %v257 = vmul.u32 %v251, 512
      %v258 = vstv %s249
      %v259 = vadd.s32 %v258, %v257
      %v260 = vadd.s32 %v259, %v253
      %v261 = vadd.s32 %v259, %v254
      %v262 = vadd.s32 %v259, %v255
      %v263 = vadd.s32 %v259, %v256
      %s264 = sld [smem:[#allocation3]]
      %v265 = vstv %s264
      %vm266 = vcmp.lt.s32.totalorder %v260, %v265
      %vm267 = vcmp.lt.s32.totalorder %v261, %v265
      %vm268 = vcmp.lt.s32.totalorder %v262, %v265
      %vm269 = vcmp.lt.s32.totalorder %v263, %v265
      %v270 = vand.u32 2147483647, %v240
      %v271 = vand.u32 2147483647, %v241
      %v272 = vand.u32 2147483647, %v242
      %v273 = vand.u32 2147483647, %v243
      %v274 = vsub.f32 0.0, %v270
      %v275 = vsub.f32 0.0, %v271
      %v276 = vsub.f32 0.0, %v272
      %v277 = vsub.f32 0.0, %v273
      %v278 = vmul.f32 %v274, 1.442695
      %v279 = vpow.pop %v278
      %v280 = vmul.f32 %v275, 1.442695
      %v281 = vpow.pop %v280
      %v282 = vmul.f32 %v276, 1.442695
      %v283 = vpow.pop %v282
      %v284 = vmul.f32 %v277, 1.442695
      %v285 = vpow.pop %v284
      %v286 = vadd.f32 %v279, 1.0
      %v287 = vadd.f32 %v281, 1.0
      %v288 = vadd.f32 %v283, 1.0
      %v289 = vadd.f32 %v285, 1.0
      %v290 = vrcp.pop %v286
      %v291 = vmul.f32 1.0, %v290
      %v292 = vrcp.pop %v287
      %v293 = vmul.f32 1.0, %v292
      %v294 = vrcp.pop %v288
      %v295 = vmul.f32 1.0, %v294
      %v296 = vrcp.pop %v289
      %v297 = vmul.f32 1.0, %v296
      %vm298 = vcmp.ge.f32.partialorder %v240, 0.0
      %vm299 = vcmp.ge.f32.partialorder %v241, 0.0
      %vm300 = vcmp.ge.f32.partialorder %v242, 0.0
      %vm301 = vcmp.ge.f32.partialorder %v243, 0.0
      %v302 = vmul.f32 %v279, %v291
      %v303 = vmul.f32 %v281, %v293
      %v304 = vmul.f32 %v283, %v295
      %v305 = vmul.f32 %v285, %v297
      %v306 = vsel %vm298, %v291, %v302
      %v307 = vsel %vm299, %v293, %v303
      %v308 = vsel %vm300, %v295, %v304
      %v309 = vsel %vm301, %v297, %v305
      %v310 = vmax.f32 %v240, 0.0
      %v311 = vmax.f32 %v241, 0.0
      %v312 = vmax.f32 %v242, 0.0
      %v313 = vmax.f32 %v243, 0.0
      %v314 = vmul.f32 %v240, %v244
      %v315 = vmul.f32 %v241, %v245
      %v316 = vmul.f32 %v242, %v246
      %v317 = vmul.f32 %v243, %v247
      %v318 = vsub.f32 %v310, %v314
      %v319 = vsub.f32 %v311, %v315
      %v320 = vsub.f32 %v312, %v316
      %v321 = vsub.f32 %v313, %v317
      %v322 = vadd.f32 %v279, 1.0
      %v323 = vlog2.pop %v322
      %v324 = vmul.f32 %v323, 0.6931472
      %v325 = vmul.f32 -0.5, %v279
      %v326 = vadd.f32 %v325, 1.0
      %v327 = vmul.f32 %v326, %v279
      %v328 = vand.u32 2147483647, %v279
      %vm329 = vcmp.lt.f32.partialorder %v328, 0.0004427343
      %v330 = vsel %vm329, %v327, %v324
      %v331 = vadd.f32 %v281, 1.0
      %v332 = vlog2.pop %v331
      %v333 = vmul.f32 %v332, 0.6931472
      %v334 = vmul.f32 -0.5, %v281
      %v335 = vadd.f32 %v334, 1.0
      %v336 = vmul.f32 %v335, %v281
      %v337 = vand.u32 2147483647, %v281
      %vm338 = vcmp.lt.f32.partialorder %v337, 0.0004427343
      %v339 = vsel %vm338, %v336, %v333
      %v340 = vadd.f32 %v283, 1.0
      %v341 = vlog2.pop %v340
      %v342 = vmul.f32 %v341, 0.6931472
      %v343 = vmul.f32 -0.5, %v283
      %v344 = vadd.f32 %v343, 1.0
      %v345 = vmul.f32 %v344, %v283
      %v346 = vand.u32 2147483647, %v283
      %vm347 = vcmp.lt.f32.partialorder %v346, 0.0004427343
      %v348 = vsel %vm347, %v345, %v342
      %v349 = vadd.f32 %v285, 1.0
      %v350 = vlog2.pop %v349
      %v351 = vmul.f32 %v350, 0.6931472
      %v352 = vmul.f32 -0.5, %v285
      %v353 = vadd.f32 %v352, 1.0
      %v354 = vmul.f32 %v353, %v285
      %v355 = vand.u32 2147483647, %v285
      %vm356 = vcmp.lt.f32.partialorder %v355, 0.0004427343
      %v357 = vsel %vm356, %v354, %v351
      %v358 = vadd.f32 %v318, %v330
      %v359 = vadd.f32 %v319, %v339
      %v360 = vadd.f32 %v320, %v348
      %v361 = vadd.f32 %v321, %v357
      %vm362 = vcmp.gt.f32.partialorder %v244, 0.5
      %vm363 = vcmp.gt.f32.partialorder %v245, 0.5
      %vm364 = vcmp.gt.f32.partialorder %v246, 0.5
      %vm365 = vcmp.gt.f32.partialorder %v247, 0.5
      %v366 = vsub.f32 1.0, %v306
      %v367 = vsub.f32 1.0, %v307
      %v368 = vsub.f32 1.0, %v308
      %v369 = vsub.f32 1.0, %v309
      %v370 = vsel %vm362, %v306, %v366
      %v371 = vsel %vm363, %v307, %v367
      %v372 = vsel %vm364, %v308, %v368
      %v373 = vsel %vm365, %v309, %v369
      %v374 = vsub.f32 1.0, %v370
      %v375 = vsub.f32 1.0, %v371
      %v376 = vsub.f32 1.0, %v372
      %v377 = vsub.f32 1.0, %v373
      %v378 = vmul.f32 %v374, 0.8
      %v379 = vmul.f32 %v375, 0.8
      %v380 = vmul.f32 %v376, 0.8
      %v381 = vmul.f32 %v377, 0.8
      %v382 = vmul.f32 %v378, %v374
      %v383 = vmul.f32 %v379, %v375
      %v384 = vmul.f32 %v380, %v376
      %v385 = vmul.f32 %v381, %v377
      %v386 = vmul.f32 %v382, %v358
      %v387 = vmul.f32 %v383, %v359
      %v388 = vmul.f32 %v384, %v360
      %v389 = vmul.f32 %v385, %v361
      %v390 = vmul.f32 %v306, %v244
      %v391 = vmul.f32 %v307, %v245
      %v392 = vmul.f32 %v308, %v246
      %v393 = vmul.f32 %v309, %v247
      %v394 = vsel %vm266, %v390, 0.0
      %v395 = vsel %vm267, %v391, 0.0
      %v396 = vsel %vm268, %v392, 0.0
      %v397 = vsel %vm269, %v393, 0.0
      %v398 = vsub.f32 %v306, %v390
      %v399 = vsub.f32 %v307, %v391
      %v400 = vsub.f32 %v308, %v392
      %v401 = vsub.f32 %v309, %v393
      %v402 = vsel %vm266, %v398, 0.0
      %v403 = vsel %vm267, %v399, 0.0
      %v404 = vsel %vm268, %v400, 0.0
      %v405 = vsel %vm269, %v401, 0.0
      %v406 = vsub.f32 %v244, %v390
      %v407 = vsub.f32 %v245, %v391
      %v408 = vsub.f32 %v246, %v392
      %v409 = vsub.f32 %v247, %v393
      %v410 = vsel %vm266, %v406, 0.0
      %v411 = vsel %vm267, %v407, 0.0
      %v412 = vsel %vm268, %v408, 0.0
      %v413 = vsel %vm269, %v409, 0.0
      %v414 = vsel %vm266, %v386, 0.0
      %v415 = vsel %vm267, %v387, 0.0
      %v416 = vsel %vm268, %v388, 0.0
      %v417 = vsel %vm269, %v389, 0.0
      %v418 = vld [vmem:[%s219] sm:$0xff]
      %v419 = vld [vmem:[%s219 + $0x8] sm:$0xff]
      %v420 = vld [vmem:[%s219 + $0x10] sm:$0xff]
      %v421 = vld [vmem:[%s219 + $0x18] sm:$0xff]
      %v422 = vadd.f32 %v394, 0.0
      %v423 = vadd.f32 %v395, 0.0
      %v424 = vadd.f32 %v396, 0.0
      %v425 = vadd.f32 %v397, 0.0
      %v426 = vadd.f32 %v418, %v422
      %v427 = vadd.f32 %v419, %v423
      %v428 = vadd.f32 %v420, %v424
      %v429 = vadd.f32 %v421, %v425
      %430 = vst [vmem:[%s219] sm:$0xff] %v426
      %431 = vst [vmem:[%s219 + $0x8] sm:$0xff] %v427
      %432 = vst [vmem:[%s219 + $0x10] sm:$0xff] %v428
      %433 = vst [vmem:[%s219 + $0x18] sm:$0xff] %v429
      %s434 = scalar_lea.vmem %s219, 32
      %v435 = vld [vmem:[%s434] sm:$0xff]
      %v436 = vld [vmem:[%s434 + $0x8] sm:$0xff]
      %v437 = vld [vmem:[%s434 + $0x10] sm:$0xff]
      %v438 = vld [vmem:[%s434 + $0x18] sm:$0xff]
      %v439 = vadd.f32 %v402, 0.0
      %v440 = vadd.f32 %v403, 0.0
      %v441 = vadd.f32 %v404, 0.0
      %v442 = vadd.f32 %v405, 0.0
      %v443 = vadd.f32 %v435, %v439
      %v444 = vadd.f32 %v436, %v440
      %v445 = vadd.f32 %v437, %v441
      %v446 = vadd.f32 %v438, %v442
      %447 = vst [vmem:[%s434] sm:$0xff] %v443
      %448 = vst [vmem:[%s434 + $0x8] sm:$0xff] %v444
      %449 = vst [vmem:[%s434 + $0x10] sm:$0xff] %v445
      %450 = vst [vmem:[%s434 + $0x18] sm:$0xff] %v446
      %s451 = scalar_lea.vmem %s219, 64
      %v452 = vld [vmem:[%s451] sm:$0xff]
      %v453 = vld [vmem:[%s451 + $0x8] sm:$0xff]
      %v454 = vld [vmem:[%s451 + $0x10] sm:$0xff]
      %v455 = vld [vmem:[%s451 + $0x18] sm:$0xff]
      %v456 = vadd.f32 %v410, 0.0
      %v457 = vadd.f32 %v411, 0.0
      %v458 = vadd.f32 %v412, 0.0
      %v459 = vadd.f32 %v413, 0.0
      %v460 = vadd.f32 %v452, %v456
      %v461 = vadd.f32 %v453, %v457
      %v462 = vadd.f32 %v454, %v458
      %v463 = vadd.f32 %v455, %v459
      %464 = vst [vmem:[%s451] sm:$0xff] %v460
      %465 = vst [vmem:[%s451 + $0x8] sm:$0xff] %v461
      %466 = vst [vmem:[%s451 + $0x10] sm:$0xff] %v462
      %467 = vst [vmem:[%s451 + $0x18] sm:$0xff] %v463
      %s468 = scalar_lea.vmem %s219, 96
      %v469 = vld [vmem:[%s468] sm:$0xff]
      %v470 = vld [vmem:[%s468 + $0x8] sm:$0xff]
      %v471 = vld [vmem:[%s468 + $0x10] sm:$0xff]
      %v472 = vld [vmem:[%s468 + $0x18] sm:$0xff]
      %v473 = vadd.f32 %v414, 0.0
      %v474 = vadd.f32 %v415, 0.0
      %v475 = vadd.f32 %v416, 0.0
      %v476 = vadd.f32 %v417, 0.0
      %v477 = vadd.f32 %v469, %v473
      %v478 = vadd.f32 %v470, %v474
      %v479 = vadd.f32 %v471, %v475
      %v480 = vadd.f32 %v472, %v476
      %481 = vst [vmem:[%s468] sm:$0xff] %v477
      %482 = vst [vmem:[%s468 + $0x8] sm:$0xff] %v478
      %483 = vst [vmem:[%s468 + $0x10] sm:$0xff] %v479
      %484 = vst [vmem:[%s468 + $0x18] sm:$0xff] %v480
      %p485 = scmp.lt.s32.totalorder %s19, 1
      %s486 = scalar_select %p485, %s19, 1
      %s487 = smul.addr %s486, 16
      %s488 = smul.addr %s487, 8
      %s489 = scalar_lea.vmem %s3, %s488
      // Predicated region
      $region33: #{hybrid_loss.1} parent=27 // pred_check
        %p490 = pneg %p109
      $region34: #{hybrid_loss.1} parent=27 // pred_check_branch
        %492 = sbr.rel (%p490) target = $region36
      $region35: #{hybrid_loss.1} parent=27 // pred_region
        _
      $region36: #{hybrid_loss.1} parent=27 // pred_fallthru
        _
    $region28: #{hybrid_loss.1} parent=5 // pred_fallthru
      _
    %p493 = scmp.le.s32.totalorder 2, %s10
    // Predicated region
    $region37: #{hybrid_loss.1} parent=5 // pred_check
      %p494 = pneg %p493
    $region38: #{hybrid_loss.1} parent=5 // pred_check_branch
      %496 = sbr.rel (%p494) target = $region40
    $region39: #{hybrid_loss.1} parent=5 // pred_region
      %s497 = ssub.s32 %s10, 2
      // Predicated region
      $region41: #{hybrid_loss.1} parent=39 // pred_check
        %p498 = pneg %p115
      $region42: #{hybrid_loss.1} parent=39 // pred_check_branch
        %500 = sbr.rel (%p498) target = $region44
      $region43: #{hybrid_loss.1} parent=39 // pred_region
        %p501 = scmp.lt.s32.totalorder %s21, 1
        %s502 = scalar_select %p501, %s21, 1
        %s503 = smul.addr %s502, 16
        %s504 = smul.addr %s503, 8
        %s505 = scalar_lea.vmem %s3, %s504
      $region44: #{hybrid_loss.1} parent=39 // pred_fallthru
        _
    $region40: #{hybrid_loss.1} parent=5 // pred_fallthru
      _
  $region6: #{hybrid_loss.1} parent=0 // loop_footer
    %s14 = sadd.s32 1, %s10
  $region7: #{hybrid_loss.1} parent=0 // loop_footer_branch
    %9 = sbr.rel target = $region3
  $region8: #{hybrid_loss.1} parent=0 // loop_exit
    _

</llo_original>
